<compile_context>
chip_gen: v5e
topology: v5e:2x2
jax: 0.10.0
libtpu: 0.0.40
codegen_flags: <defaults>
</compile_context>

<pallas_src>
import functools

import jax
import jax.numpy as jnp
from jax import lax
from jax.experimental import pallas as pl
from jax.experimental.pallas import tpu as pltpu

SMOOTHING_CONST = 0.1
EPS_NORM = 1e-12          # torch F.normalize default eps
NEG_INF = -1e30           # finite "minus infinity" for masked (padded) class columns


def _round_up(v, m):
    return (v + m - 1) // m * m


def _proxynca_kernel(x_ref, pt_ref, t_ref, out_ref, *, on_weight, off_weight,
                     num_valid_classes, needs_class_mask, use_bf16):
    """One batch tile: (TN, E_pad) x, (E_pad, C_pad) pre-normalized proxies^T,
    (TN, 1) int32 labels -> (1, TN) per-row losses (lane-dense)."""
    x = x_ref[...].astype(jnp.float32)                       # (TN, E_pad)
    labels = t_ref[...]                                      # (TN, 1) int32

    # Per-row scale folds: L2 normalization (x / max(||x||, eps) == x * rsqrt(...)) and
    # the -18 factor from D = 18 - 18*cos (the +18 shift cancels in log_softmax).
    # rsqrt runs on the EUP slot; multiply is cheaper than divide on the VALU.
    row_scale = jnp.float32(-18.0) * lax.rsqrt(
        jnp.maximum(jnp.sum(x * x, axis=-1, keepdims=True),
                    jnp.float32(EPS_NORM * EPS_NORM)))
    x_mm = x * row_scale                                     # (TN, E_pad)
    if use_bf16:
        x_mm = x_mm.astype(jnp.bfloat16)                     # proxies already bf16

    # logits[i, j] = -18 * cos(x_i, p_j)  ==  D[i, j] up to a per-row constant shift.
    # Canonical (M,K)x(K,N) contraction on the MXU, f32 accumulation.
    logits = jnp.dot(x_mm, pt_ref[...],
                     preferred_element_type=jnp.float32)     # (TN, C_pad)

    n_rows, c_pad = logits.shape
    col = lax.broadcasted_iota(jnp.int32, (n_rows, c_pad), 1)

    if needs_class_mask:
        valid = col < num_valid_classes
        logits = jnp.where(valid, logits, jnp.float32(NEG_INF))

    # log_softmax over the (true) class axis; padded columns contribute exp(~-inf)=0.
    m = jnp.max(logits, axis=-1, keepdims=True)
    z = logits - m
    lse = jnp.log(jnp.sum(jnp.exp(z), axis=-1, keepdims=True))
    log_sm = z - lse                                         # (TN, C_pad)

    # Smoothed one-hot target folded into the weights of a single fused reduction.
    w = jnp.where(col == labels, jnp.float32(on_weight), jnp.float32(off_weight))
    if needs_class_mask:
        w = jnp.where(valid, w, jnp.float32(0.0))
    loss_rows = jnp.sum(w * log_sm, axis=-1)                 # (TN,)

    # Lane-dense per-row losses (one row of the (1, N_pad) output).
    out_ref[...] = (-loss_rows)[None, :]                     # (1, TN)


def proxynca_loss(x, proxies, labels, *, smoothing_const=SMOOTHING_CONST,
                  tile_n=256, use_bf16_matmul=False, vmem_limit_bytes=None):
    """x: (N, E) float, proxies: (C, E) float, labels: (N,) int -> scalar f32 mean loss."""
    n, e = x.shape
    c, e2 = proxies.shape
    assert e == e2, (e, e2)
    assert c > 1, "ProxyNCA smoothing needs nb_classes > 1"
    assert tile_n % 128 == 0, "tile_n must be a lane multiple"

    x = x.astype(jnp.float32)
    p = proxies.astype(jnp.float32)

    # ---- Hoisted, grid-invariant proxy preparation (done once, not per batch tile) ----
    # L2 normalize: p / max(||p||, eps).  (All-zero proxy rows assumed absent; they hold
    # for the randn/8 init of the module.)
    p_hat = p * lax.rsqrt(jnp.maximum(jnp.sum(p * p, axis=-1, keepdims=True),
                                      EPS_NORM * EPS_NORM))

    # Zero-pad the embedding dim to lane width (exact: zeros add nothing to norms/dots).
    e_pad = _round_up(e, 128)
    if e_pad != e:
        x = jnp.pad(x, ((0, 0), (0, e_pad - e)))
        p_hat = jnp.pad(p_hat, ((0, 0), (0, e_pad - e)))

    # Pad the class dim to lane width with dummy (zero) proxies; masked out in-kernel.
    c_pad = _round_up(c, 128)
    if c_pad != c:
        p_hat = jnp.pad(p_hat, ((0, c_pad - c), (0, 0)))

    # Pre-transpose to the canonical (K, N) MXU operand; optional bf16 cast halves the
    # resident proxies VMEM/HBM footprint.
    p_t = p_hat.T                                            # (E_pad, C_pad)
    if use_bf16_matmul:
        p_t = p_t.astype(jnp.bfloat16)

    # ---- Batch tiling ----
    tn = min(tile_n, _round_up(n, 8))
    n_pad = _round_up(n, tn)
    if n_pad != n:
        x = jnp.pad(x, ((0, n_pad - n), (0, 0)))
        labels = jnp.pad(labels, (0, n_pad - n))
    labels_2d = labels.astype(jnp.int32).reshape(-1, 1)

    # Explicit VMEM budget: above v5e's 16 MiB default scoped limit, below v7x's 64 MiB
    # physical.  Estimate = double-buffered X tile + proxies + labels + live (TN, C) slabs.
    if vmem_limit_bytes is None:
        p_item = 2 if use_bf16_matmul else 4
        est = (2 * tn * e_pad * 4 + 2 * e_pad * c_pad * p_item
               + 2 * tn * 128 * 4 + 6 * tn * c_pad * 4 + (4 << 20))
        vmem_limit_bytes = min(max(est, 32 << 20), 48 << 20)

    kernel = functools.partial(
        _proxynca_kernel,
        on_weight=float(1.0 - smoothing_const),
        off_weight=float(smoothing_const) / float(c - 1),     # true class count divisor
        num_valid_classes=c,
        needs_class_mask=(c_pad != c),
        use_bf16=use_bf16_matmul)

    row_loss = pl.pallas_call(
        kernel,
        out_shape=jax.ShapeDtypeStruct((1, n_pad), jnp.float32),
        grid_spec=pltpu.PrefetchScalarGridSpec(
            num_scalar_prefetch=0,
            grid=(n_pad // tn,),
            in_specs=[
                pl.BlockSpec((tn, e_pad), lambda i: (i, 0)),      # X tile (pipelined)
                pl.BlockSpec((e_pad, c_pad), lambda i: (0, 0)),   # proxies^T, resident
                pl.BlockSpec((tn, 1), lambda i: (i, 0)),          # labels tile
            ],
            out_specs=pl.BlockSpec((1, tn), lambda i: (0, i)),    # lane-dense loss row
        ),
        compiler_params=pltpu.CompilerParams(
            dimension_semantics=("parallel",),
            vmem_limit_bytes=int(vmem_limit_bytes),
        ),
    )(x, p_t, labels_2d)

    # Mean over the real (un-padded) batch rows.
    return jnp.sum(row_loss[0, :n]) / n


def proxynca_loss_ref(x, proxies, labels, smoothing_const=SMOOTHING_CONST):
    """Pure-JAX reference mirroring the PyTorch forward exactly (for verification)."""
    def norm3(a):
        return 3.0 * a / jnp.maximum(
            jnp.sqrt(jnp.sum(a * a, axis=-1, keepdims=True)), EPS_NORM)
    x3, p3 = norm3(x), norm3(proxies)
    d = (jnp.sum(x3 * x3, -1, keepdims=True)
         + jnp.sum(p3 * p3, -1)[None, :]
         - 2.0 * x3 @ p3.T)
    d = jnp.maximum(d, 0.0)
    log_sm = jax.nn.log_softmax(d, axis=-1)
    c = proxies.shape[0]
    t = jnp.where(jax.nn.one_hot(labels, c) > 0,
                  1.0 - smoothing_const, smoothing_const / (c - 1))
    return jnp.mean(jnp.sum(-t * log_sm, axis=-1))


if __name__ == "__main__":
    key = jax.random.PRNGKey(0)
    k_prox, k_x, k_t, k_x2, k_t2, k_x3, k_t3 = jax.random.split(key, 7)

    nb_classes, sz_embed, batch = 16, 32, 8

    # Deterministic init matching torch.randn(nb_classes, sz_embed) / 8.
    proxies = jax.random.normal(k_prox, (nb_classes, sz_embed), jnp.float32) / 8.0
    x = jax.random.normal(k_x, (batch, sz_embed), jnp.float32)
    labels = jax.random.randint(k_t, (batch,), 0, nb_classes, jnp.int32)

    # f32 MXU path (parity check against the exact reference).
    loss = jax.block_until_ready(proxynca_loss(x, proxies, labels))
    loss_ref = jax.block_until_ready(proxynca_loss_ref(x, proxies, labels))
    assert jnp.isfinite(loss)
    assert abs(float(loss) - float(loss_ref)) < 1e-4, (float(loss), float(loss_ref))

    # Batch that exercises the batch-padding / partial-tile path.
    batch2 = 12
    x2 = jax.random.normal(k_x2, (batch2, sz_embed), jnp.float32)
    labels2 = jax.random.randint(k_t2, (batch2,), 0, nb_classes, jnp.int32)
    loss2 = jax.block_until_ready(proxynca_loss(x2, proxies, labels2))
    loss2_ref = jax.block_until_ready(proxynca_loss_ref(x2, proxies, labels2))
    assert abs(float(loss2) - float(loss2_ref)) < 1e-4, (float(loss2), float(loss2_ref))

    # Multi-tile grid path (2 tiles of 128 rows, lane-dense multi-block output).
    batch3 = 160
    x3 = jax.random.normal(k_x3, (batch3, sz_embed), jnp.float32)
    labels3 = jax.random.randint(k_t3, (batch3,), 0, nb_classes, jnp.int32)
    loss3 = jax.block_until_ready(proxynca_loss(x3, proxies, labels3, tile_n=128))
    loss3_ref = jax.block_until_ready(proxynca_loss_ref(x3, proxies, labels3))
    assert abs(float(loss3) - float(loss3_ref)) < 1e-4, (float(loss3), float(loss3_ref))

    # bf16 MXU-operand path (production option for large E/C); looser tolerance.
    loss_bf16 = jax.block_until_ready(
        proxynca_loss(x, proxies, labels, use_bf16_matmul=True))
    assert jnp.isfinite(loss_bf16)
    assert abs(float(loss_bf16) - float(loss_ref)) < 5e-2 * max(1.0, abs(float(loss_ref))), (
        float(loss_bf16), float(loss_ref))

    print("KERNEL_OK")
</pallas_src>

<mosaic_0001>
module attributes {stable_mosaic.version = 11 : i64} {
  func.func @_proxynca_kernel(%arg0: i32, %arg1: memref<8x128xf32, #tpu.memory_space<vmem>>, %arg2: memref<128x128xf32, #tpu.memory_space<vmem>>, %arg3: memref<8x1xi32, #tpu.memory_space<vmem>>, %arg4: memref<1x8xf32, #tpu.memory_space<vmem>>) attributes {dimension_semantics = [#tpu.dimension_semantics<parallel>], iteration_bounds = array<i64: 1>, scalar_prefetch = 0 : i64, scratch_operands = 0 : i64, tpu.core_type = #tpu.core_type<tc>, window_params = [{transform_indices = @transform_0, window_bounds = array<i64: 8, 128>}, {pipeline_mode = #tpu.pipeline_mode<synchronous>, transform_indices = @transform_1, window_bounds = array<i64: 128, 128>}, {transform_indices = @transform_2, window_bounds = array<i64: 8, 1>}, {transform_indices = @transform_3, window_bounds = array<i64: 1, 8>}]} {
    %c0 = arith.constant 0 : index
    %c0_0 = arith.constant 0 : index
    %0 = vector.load %arg1[%c0, %c0_0] : memref<8x128xf32, #tpu.memory_space<vmem>>, vector<8x128xf32>
    %c0_1 = arith.constant 0 : index
    %c0_2 = arith.constant 0 : index
    %1 = vector.load %arg3[%c0_1, %c0_2] : memref<8x1xi32, #tpu.memory_space<vmem>>, vector<8x1xi32>
    %2 = arith.mulf %0, %0 : vector<8x128xf32>
    %cst = arith.constant dense<0.000000e+00> : vector<8xf32>
    %3 = vector.multi_reduction <add>, %2, %cst [1] : vector<8x128xf32> to vector<8xf32>
    %4 = vector.shape_cast %3 : vector<8xf32> to vector<8x1xf32>
    %cst_3 = arith.constant 1.000000e-24 : f32
    %5 = vector.broadcast %cst_3 : f32 to vector<8x1xf32>
    %6 = arith.maximumf %4, %5 : vector<8x1xf32>
    %7 = math.rsqrt %6 : vector<8x1xf32>
    %cst_4 = arith.constant -1.800000e+01 : f32
    %8 = vector.broadcast %cst_4 : f32 to vector<8x1xf32>
    %9 = arith.mulf %8, %7 : vector<8x1xf32>
    %10 = vector.broadcast %9 : vector<8x1xf32> to vector<8x128xf32>
    %11 = arith.mulf %0, %10 : vector<8x128xf32>
    %c0_5 = arith.constant 0 : index
    %c0_6 = arith.constant 0 : index
    %12 = vector.load %arg2[%c0_5, %c0_6] : memref<128x128xf32, #tpu.memory_space<vmem>>, vector<128x128xf32>
    %cst_7 = arith.constant dense<0.000000e+00> : vector<8x128xf32>
    %13 = tpu.matmul %11, %12, %cst_7 {dimension_numbers = #tpu.dot_dimension_numbers<[1], [0], [0], [1], [0, 0, 1, 1], [], []>} : vector<8x128xf32>, vector<128x128xf32>, vector<8x128xf32> -> vector<8x128xf32>
    %14 = tpu.iota {dimensions = array<i32: 1>} : vector<8x128xi32>
    %c16_i32 = arith.constant 16 : i32
    %15 = vector.broadcast %c16_i32 : i32 to vector<8x128xi32>
    %16 = arith.cmpi slt, %14, %15 : vector<8x128xi32>
    %cst_8 = arith.constant -1.000000e+30 : f32
    %17 = vector.broadcast %cst_8 : f32 to vector<8x128xf32>
    %18 = arith.select %16, %13, %17 : vector<8x128xi1>, vector<8x128xf32>
    %cst_9 = arith.constant dense<0xFF800000> : vector<8xf32>
    %19 = vector.multi_reduction <maximumf>, %18, %cst_9 [1] : vector<8x128xf32> to vector<8xf32>
    %20 = vector.shape_cast %19 : vector<8xf32> to vector<8x1xf32>
    %21 = vector.broadcast %20 : vector<8x1xf32> to vector<8x128xf32>
    %22 = arith.subf %18, %21 : vector<8x128xf32>
    %23 = math.exp %22 : vector<8x128xf32>
    %cst_10 = arith.constant dense<0.000000e+00> : vector<8xf32>
    %24 = vector.multi_reduction <add>, %23, %cst_10 [1] : vector<8x128xf32> to vector<8xf32>
    %25 = vector.shape_cast %24 : vector<8xf32> to vector<8x1xf32>
    %26 = math.log %25 : vector<8x1xf32>
    %27 = vector.broadcast %26 : vector<8x1xf32> to vector<8x128xf32>
    %28 = arith.subf %22, %27 : vector<8x128xf32>
    %29 = vector.broadcast %1 : vector<8x1xi32> to vector<8x128xi32>
    %30 = arith.cmpi eq, %14, %29 : vector<8x128xi32>
    %cst_11 = arith.constant 0.899999976 : f32
    %cst_12 = arith.constant 0.00666666683 : f32
    %31 = vector.broadcast %cst_11 : f32 to vector<8x128xf32>
    %32 = vector.broadcast %cst_12 : f32 to vector<8x128xf32>
    %33 = arith.select %30, %31, %32 : vector<8x128xi1>, vector<8x128xf32>
    %cst_13 = arith.constant 0.000000e+00 : f32
    %34 = vector.broadcast %cst_13 : f32 to vector<8x128xf32>
    %35 = arith.select %16, %33, %34 : vector<8x128xi1>, vector<8x128xf32>
    %36 = arith.mulf %35, %28 : vector<8x128xf32>
    %cst_14 = arith.constant dense<0.000000e+00> : vector<8xf32>
    %37 = vector.multi_reduction <add>, %36, %cst_14 [1] : vector<8x128xf32> to vector<8xf32>
    %cst_15 = arith.constant 0.000000e+00 : f32
    %38 = vector.broadcast %cst_15 : f32 to vector<8xf32>
    %39 = arith.subf %38, %37 : vector<8xf32>
    %40 = vector.shape_cast %39 : vector<8xf32> to vector<1x8xf32>
    %c0_16 = arith.constant 0 : index
    %c0_17 = arith.constant 0 : index
    %41 = vector.load %arg4[%c0_16, %c0_17] : memref<1x8xf32, #tpu.memory_space<vmem>>, vector<1x8xf32>
    tpu.vector_store %arg4[%c0_16, %c0_17], %40 {strides = array<i32>} : memref<1x8xf32, #tpu.memory_space<vmem>>, vector<1x8xf32>,
    return
  }
  func.func @transform_0(%arg0: i32) -> (i32, i32) {
    %c0_i32 = arith.constant 0 : i32
    %c0_i32_0 = arith.constant 0 : i32
    return %arg0, %c0_i32 : i32, i32
  }
  func.func @transform_1(%arg0: i32) -> (i32, i32) {
    %c0_i32 = arith.constant 0 : i32
    %c0_i32_0 = arith.constant 0 : i32
    %c0_i32_1 = arith.constant 0 : i32
    return %c0_i32, %c0_i32_0 : i32, i32
  }
  func.func @transform_2(%arg0: i32) -> (i32, i32) {
    %c0_i32 = arith.constant 0 : i32
    %c0_i32_0 = arith.constant 0 : i32
    return %arg0, %c0_i32 : i32, i32
  }
  func.func @transform_3(%arg0: i32) -> (i32, i32) {
    %c0_i32 = arith.constant 0 : i32
    %c0_i32_0 = arith.constant 0 : i32
    return %c0_i32, %arg0 : i32, i32
  }
}

</mosaic_0001>

<llo_original>
// kernel: tpu_custom_call.1
$region0: #{tpu_custom_call.1}
  #allocation0 [shape = 'u32[]', space=smem, size = 0x4, offset = 0x4, fixed_abs, tag = 'smem constant byte address 0x4 - core index']
  #allocation1 [shape = 'u32[72,128]{1,0:T(1,128)}', space=vmem, size = 0x9000, scoped, tag = 'internal scratch']
  %s0 = inlined_call_operand.vmem [shape: f32[8,128], index: 0, kind: input, shape index: {}]
  %s1 = inlined_call_operand.hbm [shape: f32[128,128], index: 1, kind: input, shape index: {}]
  %s2 = inlined_call_operand.vmem [shape: s32[8,1], index: 2, kind: input, shape index: {}]
  %s3 = inlined_call_operand.hbm [shape: f32[1,8], index: 3, kind: output, shape index: {}]
  %s4 = sld [smem:[#allocation0]]
  $region26: #{tpu_custom_call.1} parent=0
    _
  %s6 = ssub.s32 1, %s4
  %s7 = scalar_select 0, %s6, %s4
  $region1: #{tpu_custom_call.1} parent=0
    #allocation2 [shape = 'u8[65536]{0}', space=vmem, size = 0x10000, scoped, tag = 'input window, operand 1, single buffered']
    #allocation3 [shape = 's32[1]{0}', space=sflag, size = 0x4, scoped, tag = 'scoped memory for tpu_custom_call.1']
    #allocation4 [shape = 's32[1]{0}', space=sflag, size = 0x4, scoped, tag = 'scoped memory for tpu_custom_call.1']
    #allocation5 [shape = 'u8[512]{0}', space=vmem, size = 0x400, scoped, tag = 'output window, operand 0, single buffered']
    %8 = vsyncpa [#allocation3], 0
    %9 = vsyncpa [#allocation4], 0
    // Predicated region
    $region2: #{tpu_custom_call.1} parent=1 // pred_check
      _
    $region3: #{tpu_custom_call.1} parent=1 // pred_check_branch
      %11 = sbr.rel (0) target = $region5
    $region4: #{tpu_custom_call.1} parent=1 // pred_region
      _
    $region5: #{tpu_custom_call.1} parent=1 // pred_fallthru
      _
    // Predicated region
    $region6: #{tpu_custom_call.1} parent=1 // pred_check
      _
    $region7: #{tpu_custom_call.1} parent=1 // pred_check_branch
      %13 = sbr.rel (0) target = $region9
    $region8: #{tpu_custom_call.1} parent=1 // pred_region
      %15 = vsyncadd [#allocation3], 0
      %s16 = sshll.u32 %s1, 4
      %s17 = int_to_ptr.hbm [resolvable:$true] %s16
      %s18 = sshll.u32 [#allocation2], 4
      %s19 = int_to_ptr.vmem [resolvable:$true] %s18
      %24 = dma.hbm_to_vmem [thread:$0]  %s17, 2048, %s19, [#allocation3], 128, 128, 8
    $region9: #{tpu_custom_call.1} parent=1 // pred_fallthru
      _
    // Predicated region
    $region10: #{tpu_custom_call.1} parent=1 // pred_check
      _
    $region11: #{tpu_custom_call.1} parent=1 // pred_check_branch
      %26 = sbr.rel (0) target = $region13
    $region12: #{tpu_custom_call.1} parent=1 // pred_region
      _
    $region13: #{tpu_custom_call.1} parent=1 // pred_fallthru
      _
    // Predicated region
    $region14: #{tpu_custom_call.1} parent=1 // pred_check
      _
    $region15: #{tpu_custom_call.1} parent=1 // pred_check_branch
      %28 = sbr.rel (0) target = $region17
    $region16: #{tpu_custom_call.1} parent=1 // pred_region
      %30 = dma.done [#allocation3], 2048
    $region17: #{tpu_custom_call.1} parent=1 // pred_fallthru
      _
    %v31 = vld [vmem:[%s0] sm:$0xff]
    %v32 = vld [vmem:[%s2] sm:$0xff]
    %v33 = vmul.f32 %v31, %v31
    %34 = vadd.xlane.f32.xlu0 %v33
    %v35 = vpop.xlane.xlu0 %34
    %v36 = vmax.f32 %v35, 1e-24
    %v37 = vrsqrt.pop %v36
    %v38 = vmul.f32 %v37, %v36
    %v39 = vmul.f32 %v38, %v37
    %v40 = vmul.f32 0.5, %v39
    %v41 = vsub.f32 1.5, %v40
    %v42 = vmul.f32 %v37, %v41
    %vm43 = vweird.f32 %v36
    %vm44 = vweird.f32 %v37
    %vm45 = vmor %vm43, %vm44
    %v46 = vsel %vm45, %v37, %v42
    %v47 = vmul.f32 %v46, -18.0
    %v48 = vmul.f32 %v31, %v47
    %v49 = vld [vmem:[#allocation2] sm:$0xff]
    %v50 = vld [vmem:[#allocation2 + $0x8] sm:$0xff]
    %v51 = vld [vmem:[#allocation2 + $0x10] sm:$0xff]
    %v52 = vld [vmem:[#allocation2 + $0x18] sm:$0xff]
    %v53 = vld [vmem:[#allocation2 + $0x20] sm:$0xff]
    %v54 = vld [vmem:[#allocation2 + $0x28] sm:$0xff]
    %v55 = vld [vmem:[#allocation2 + $0x30] sm:$0xff]
    %v56 = vld [vmem:[#allocation2 + $0x38] sm:$0xff]
    %v57 = vld [vmem:[#allocation2 + $0x40] sm:$0xff]
    %v58 = vld [vmem:[#allocation2 + $0x48] sm:$0xff]
    %v59 = vld [vmem:[#allocation2 + $0x50] sm:$0xff]
    %v60 = vld [vmem:[#allocation2 + $0x58] sm:$0xff]
    %v61 = vld [vmem:[#allocation2 + $0x60] sm:$0xff]
    %v62 = vld [vmem:[#allocation2 + $0x68] sm:$0xff]
    %v63 = vld [vmem:[#allocation2 + $0x70] sm:$0xff]
    %v64 = vld [vmem:[#allocation2 + $0x78] sm:$0xff]
    %65 = vmatpush.msra.mxu0 %v64
    %66 = vmatpush.msra.mxu0 %v63
    %67 = vmatpush.msra.mxu0 %v62
    %68 = vmatpush.msra.mxu0 %v61
    %69 = vmatpush.msra.mxu0 %v60
    %70 = vmatpush.msra.mxu0 %v59
    %71 = vmatpush.msra.mxu0 %v58
    %72 = vmatpush.msra.mxu0 %v57
    %73 = vmatpush.msra.mxu0 %v56
    %74 = vmatpush.msra.mxu0 %v55
    %75 = vmatpush.msra.mxu0 %v54
    %76 = vmatpush.msra.mxu0 %v53
    %77 = vmatpush.msra.mxu0 %v52
    %78 = vmatpush.msra.mxu0 %v51
    %79 = vmatpush.msra.mxu0 %v50
    %80 = vmatpush.msra.mxu0 %v49
    %81 = vmatmul.f32.gmra.mxu0 %v48
    %v82 = vpop.f32.mrf.mxu0
    %v83 = vadd.f32 0.0, %v82
    %84 = vdwg.mxu0
    %v85 = vlaneseq
    %v86 = vand.u32 %v85, 127
    %vm87 = vcmp.lt.s32.totalorder %v86, 16
    %v88 = vsel %vm87, %v83, -1e+30
    %89 = vmax.xlane.f32.xlu0 %v88
    %v90 = vpop.xlane.xlu0 %89
    %v91 = vsub.f32 %v88, %v90
    %v92 = vmul.f32 %v91, 1.442695
    %v93 = vpow.pop %v92
    %94 = vadd.xlane.f32.xlu0 %v93
    %v95 = vpop.xlane.xlu0 %94
    %v96 = vlog2.pop %v95
    %v97 = vmul.f32 %v96, 0.6931472
    %v98 = vsub.f32 %v91, %v97
    %99 = vset.pattern.permute.xlu0 0
    %100 = vperm.xlu0 %99, %v32
    %v101 = vpop.permute.xlu0 %100
    %vm102 = vcmp.eq.s32.totalorder %v86, %v101
    %v103 = vsel %vm102, 0.9, 0.006666667
    %v104 = vsel %vm87, %v103, 0.0
    %v105 = vmul.f32 %v104, %v98
    %106 = vadd.xlane.f32.xlu0 %v105
    %v107 = vpop.xlane.xlu0 %106
    %v108 = vsub.f32 0.0, %v107
    %v110 = vperm.slane %v108, %v86
    %vm112 = vcmask 57344
    %113 = vst.msk [vmem:[#allocation5] sm:$0x1] %vm112, %v110
    // Predicated region
    $region18: #{tpu_custom_call.1} parent=1 // pred_check
      _
    $region19: #{tpu_custom_call.1} parent=1 // pred_check_branch
      %115 = sbr.rel (0) target = $region21
    $region20: #{tpu_custom_call.1} parent=1 // pred_region
      %117 = vsyncadd [#allocation4], 0
      %s119 = sshll.u32 [#allocation5], 4
      %s120 = int_to_ptr.vmem [resolvable:$true] %s119
      %s121 = sshll.u32 %s3, 4
      %s122 = int_to_ptr.hbm [resolvable:$true] %s121
      %124 = dma.vmem_to_hbm [thread:$0]  %s120, 16, %s122, [#allocation4]
    $region21: #{tpu_custom_call.1} parent=1 // pred_fallthru
      _
    // Predicated region
    $region22: #{tpu_custom_call.1} parent=1 // pred_check
      _
    $region23: #{tpu_custom_call.1} parent=1 // pred_check_branch
      %126 = sbr.rel (0) target = $region25
    $region24: #{tpu_custom_call.1} parent=1 // pred_region
      %128 = dma.done [#allocation4], 16
    $region25: #{tpu_custom_call.1} parent=1 // pred_fallthru
      _
    %129 = vsyncpa [#allocation3], 1
    %130 = vsyncpa [#allocation4], 1

</llo_original>
